<compile_context>
chip_gen: v7x
topology: tpu7x:2x2x1
jax: 0.10.0
libtpu: 0.0.40
codegen_flags: <defaults>
</compile_context>

<pallas_src>
import math
from functools import partial

import jax
import jax.numpy as jnp
from jax.experimental import pallas as pl
from jax.experimental.pallas import tpu as pltpu

INPUT_DIM = 3
FC_SIZES = [10, 50, 50, 10, 10]
OUT_DIM = 5            # concat([x_out(2), y_out(2), theta_out(1)], axis=1)
THETA_ROW = 4          # row of the fused head output that gets 2*pi*tanh

NUM_MID = 4            # fc1..fc4 (64x64 layers); fc0 has its own (64,8) weight
P = 64                 # padded hidden feature dim (multiple of 8, >= 50)
IN_PAD = 8             # padded input rows: 0-2 features, 7 = ones row
OUT_PAD = 8            # padded output rows (multiple of 8, >= OUT_DIM)


def contact_net_kernel(x_ref, w0_ref, wm_ref, wh_ref, out_ref):
    """Whole MLP in transposed layout, biases folded via the ones row.

    x_ref:   (IN_PAD, block_b)   rows 0-2 = x.T, row 7 = 1.0
    w0_ref:  (P, IN_PAD)         fc0 weight+bias, ones-row keeper at [63,7]
    wm_ref:  (NUM_MID, P, P)     fc1..fc4 weight+bias, ones keeper at [63,63]
    wh_ref:  (OUT_PAD, P)        fused heads [x(2), y(2), theta(1)] + bias col
    out_ref: (OUT_PAD, block_b)
    """
    # Layer 0: contracts only K=8 (no zero-padded HBM traffic).
    h = jnp.maximum(
        jnp.dot(w0_ref[...], x_ref[...], preferred_element_type=jnp.float32),
        0.0)                                                   # (P, block_b)
    for l in range(NUM_MID):                                   # unrolled, static
        h = jnp.maximum(
            jnp.dot(wm_ref[l], h, preferred_element_type=jnp.float32),
            0.0)

    # Fused heads: rows 0-1 = out_x, 2-3 = out_y, 4 = out_theta, 5-7 = zero.
    z = jnp.dot(wh_ref[...], h, preferred_element_type=jnp.float32)
    # tanh only on the single theta row (EUP), merged with a row-mask select
    # so the store stays one dense full-lane write.
    t = 2.0 * jnp.pi * jnp.tanh(z[THETA_ROW:THETA_ROW + 1, :])  # (1, block_b)
    row = jax.lax.broadcasted_iota(jnp.int32, z.shape, 0)
    out_ref[...] = jnp.where(row == THETA_ROW, t, z)


def init_params(key):
    """Deterministic PyTorch-Linear-style init.  w: (out,in), b: (out,)."""
    dims = [(INPUT_DIM, FC_SIZES[0])] + list(zip(FC_SIZES[:-1], FC_SIZES[1:]))
    dims += [(FC_SIZES[-1], 2),   # out_x
             (FC_SIZES[-1], 2),   # out_y
             (FC_SIZES[-1], 1)]   # out_theta
    params = []
    for fan_in, fan_out in dims:
        key, kw, kb = jax.random.split(key, 3)
        bound = 1.0 / math.sqrt(fan_in)
        w = jax.random.uniform(kw, (fan_out, fan_in), jnp.float32, -bound, bound)
        b = jax.random.uniform(kb, (fan_out,), jnp.float32, -bound, bound)
        params.append((w, b))
    return params


def pack_params(params):
    """Pack 8 (w,b) pairs into 3 slabs with biases folded via the ones row.

    Returns (w0, wm, wh); call once per parameter set (hoisted out of forward).
    """
    # fc0: (P, IN_PAD). Bias in column IN_PAD-1; ones-row keeper at [P-1, IN_PAD-1].
    w0f, b0 = params[0]
    w0 = jnp.zeros((P, IN_PAD), jnp.float32)
    w0 = w0.at[:w0f.shape[0], :w0f.shape[1]].set(w0f)
    w0 = w0.at[:b0.shape[0], IN_PAD - 1].set(b0)
    w0 = w0.at[P - 1, IN_PAD - 1].set(1.0)

    # fc1..fc4: (NUM_MID, P, P). Bias in column P-1; ones keeper at [P-1, P-1].
    wm = jnp.zeros((NUM_MID, P, P), jnp.float32)
    for l in range(NUM_MID):
        w, b = params[l + 1]
        wm = wm.at[l, :w.shape[0], :w.shape[1]].set(w)
        wm = wm.at[l, :b.shape[0], P - 1].set(b)
        wm = wm.at[l, P - 1, P - 1].set(1.0)

    # Fused heads out_x | out_y | out_theta -> (OUT_PAD, P), bias in column P-1.
    w_head = jnp.concatenate([params[5][0], params[6][0], params[7][0]], axis=0)
    b_head = jnp.concatenate([params[5][1], params[6][1], params[7][1]], axis=0)
    wh = jnp.zeros((OUT_PAD, P), jnp.float32)
    wh = wh.at[:OUT_DIM, :w_head.shape[1]].set(w_head)
    wh = wh.at[:OUT_DIM, P - 1].set(b_head)
    return w0, wm, wh


@partial(jax.jit, static_argnames=("block_b",))
def contact_net_forward(x, w0, wm, wh, *, block_b=512):
    """Pallas wrapper: lane-dense transposed layout, batch tiled by block_b."""
    assert block_b % 128 == 0, "batch tile must be lane-dense (multiple of 128)"
    B = x.shape[0]
    B128 = pl.cdiv(B, 128) * 128               # lane-dense minimum
    bb = min(block_b, B128)
    # If the batch allows it, keep >=2 grid steps so the "parallel" grid axis
    # shards across v7x's 2 TensorCores (harmless on v5e/v6e).
    if B128 > 128:
        bb = min(bb, max(128, (B128 // 2) // 128 * 128))
    B_pad = pl.cdiv(B, bb) * bb
    grid = (B_pad // bb,)

    # Small (8, B_pad) staged input: rows 0-2 = features, row 7 = ones row
    # (carries the folded biases).  Fuses with the pallas_call under jit.
    x_t = jnp.zeros((IN_PAD, B_pad), jnp.float32)
    x_t = x_t.at[:INPUT_DIM, :B].set(x.T)
    x_t = x_t.at[IN_PAD - 1, :].set(1.0)

    # Advisory cost for XLA scheduling (true, un-padded arithmetic).
    layer_io = ([(INPUT_DIM, FC_SIZES[0])]
                + list(zip(FC_SIZES[:-1], FC_SIZES[1:]))
                + [(FC_SIZES[-1], OUT_DIM)])
    flops = 2 * B_pad * sum(i * o for i, o in layer_io)
    bytes_accessed = 4 * (IN_PAD * B_pad + P * IN_PAD + NUM_MID * P * P
                          + OUT_PAD * P + OUT_PAD * B_pad)

    out = pl.pallas_call(
        contact_net_kernel,
        out_shape=jax.ShapeDtypeStruct((OUT_PAD, B_pad), jnp.float32),
        grid=grid,
        in_specs=[
            pl.BlockSpec((IN_PAD, bb), lambda i: (0, i)),
            pl.BlockSpec((P, IN_PAD), lambda i: (0, 0)),
            pl.BlockSpec((NUM_MID, P, P), lambda i: (0, 0, 0)),
            pl.BlockSpec((OUT_PAD, P), lambda i: (0, 0)),
        ],
        out_specs=pl.BlockSpec((OUT_PAD, bb), lambda i: (0, i)),
        compiler_params=pltpu.CompilerParams(
            dimension_semantics=("parallel",)),
        cost_estimate=pl.CostEstimate(
            flops=int(flops),
            transcendentals=int(B_pad),
            bytes_accessed=int(bytes_accessed)),
    )(x_t, w0, wm, wh)

    # Back to PyTorch layout: rows [x(2), y(2), theta(1)] -> (B, 5).
    return out[:OUT_DIM, :B].T


def reference_forward(x, params):
    """Pure-JAX reference mirroring ContactNet.forward (peg_* = None)."""
    h = x
    for w, b in params[:5]:
        h = jax.nn.relu(h @ w.T + b)
    x_out = h @ params[5][0].T + params[5][1]
    y_out = h @ params[6][0].T + params[6][1]
    t_out = 2.0 * jnp.pi * jnp.tanh(h @ params[7][0].T + params[7][1])
    return jnp.concatenate([x_out, y_out, t_out], axis=1)


if __name__ == "__main__":
    key = jax.random.PRNGKey(0)
    key_x, key_x2, key_p = jax.random.split(key, 3)

    params = init_params(key_p)
    w0, wm, wh = pack_params(params)        # packed once, reused across calls

    # Small-batch sanity check (single grid step).
    B = 16
    x = jax.random.normal(key_x, (B, INPUT_DIM), dtype=jnp.float32)
    out = jax.block_until_ready(contact_net_forward(x, w0, wm, wh))
    ref = reference_forward(x, params)
    assert out.shape == (B, OUT_DIM)
    assert jnp.allclose(out, ref, atol=1e-4, rtol=1e-4), "mismatch vs reference (B=16)"

    # Larger batch exercising padding + a multi-step grid (megacore split).
    B2 = 300
    x2 = jax.random.normal(key_x2, (B2, INPUT_DIM), dtype=jnp.float32)
    out2 = jax.block_until_ready(contact_net_forward(x2, w0, wm, wh))
    ref2 = reference_forward(x2, params)
    assert out2.shape == (B2, OUT_DIM)
    assert jnp.allclose(out2, ref2, atol=1e-4, rtol=1e-4), "mismatch vs reference (B=300)"

    print("KERNEL_OK")
</pallas_src>

<mosaic_0001>
module attributes {stable_mosaic.version = 11 : i64} {
  func.func @contact_net_kernel(%arg0: i32, %arg1: memref<8x128xf32, #tpu.memory_space<vmem>>, %arg2: memref<64x8xf32, #tpu.memory_space<vmem>>, %arg3: memref<4x64x64xf32, #tpu.memory_space<vmem>>, %arg4: memref<8x64xf32, #tpu.memory_space<vmem>>, %arg5: memref<8x128xf32, #tpu.memory_space<vmem>>) attributes {dimension_semantics = [#tpu.dimension_semantics<parallel>], iteration_bounds = array<i64: 1>, scalar_prefetch = 0 : i64, scratch_operands = 0 : i64, tpu.core_type = #tpu.core_type<tc>, window_params = [{transform_indices = @transform_0, window_bounds = array<i64: 8, 128>}, {pipeline_mode = #tpu.pipeline_mode<synchronous>, transform_indices = @transform_1, window_bounds = array<i64: 64, 8>}, {pipeline_mode = #tpu.pipeline_mode<synchronous>, transform_indices = @transform_2, window_bounds = array<i64: 4, 64, 64>}, {pipeline_mode = #tpu.pipeline_mode<synchronous>, transform_indices = @transform_3, window_bounds = array<i64: 8, 64>}, {transform_indices = @transform_4, window_bounds = array<i64: 8, 128>}]} {
    %c0 = arith.constant 0 : index
    %c0_0 = arith.constant 0 : index
    %0 = vector.load %arg2[%c0, %c0_0] : memref<64x8xf32, #tpu.memory_space<vmem>>, vector<64x8xf32>
    %c0_1 = arith.constant 0 : index
    %c0_2 = arith.constant 0 : index
    %1 = vector.load %arg1[%c0_1, %c0_2] : memref<8x128xf32, #tpu.memory_space<vmem>>, vector<8x128xf32>
    %cst = arith.constant dense<0.000000e+00> : vector<64x128xf32>
    %2 = tpu.matmul %0, %1, %cst {dimension_numbers = #tpu.dot_dimension_numbers<[1], [0], [0], [1], [0, 0, 1, 1], [], []>} : vector<64x8xf32>, vector<8x128xf32>, vector<64x128xf32> -> vector<64x128xf32>
    %cst_3 = arith.constant 0.000000e+00 : f32
    %3 = vector.broadcast %cst_3 : f32 to vector<64x128xf32>
    %4 = arith.maximumf %2, %3 : vector<64x128xf32>
    %c0_4 = arith.constant 0 : index
    %c0_5 = arith.constant 0 : index
    %c0_6 = arith.constant 0 : index
    %5 = vector.load %arg3[%c0_4, %c0_5, %c0_6] : memref<4x64x64xf32, #tpu.memory_space<vmem>>, vector<1x64x64xf32>
    %6 = vector.shape_cast %5 : vector<1x64x64xf32> to vector<64x64xf32>
    %cst_7 = arith.constant dense<0.000000e+00> : vector<64x128xf32>
    %7 = tpu.matmul %6, %4, %cst_7 {dimension_numbers = #tpu.dot_dimension_numbers<[1], [0], [0], [1], [0, 0, 1, 1], [], []>} : vector<64x64xf32>, vector<64x128xf32>, vector<64x128xf32> -> vector<64x128xf32>
    %cst_8 = arith.constant 0.000000e+00 : f32
    %8 = vector.broadcast %cst_8 : f32 to vector<64x128xf32>
    %9 = arith.maximumf %7, %8 : vector<64x128xf32>
    %c1 = arith.constant 1 : index
    %c0_9 = arith.constant 0 : index
    %c0_10 = arith.constant 0 : index
    %10 = vector.load %arg3[%c1, %c0_9, %c0_10] : memref<4x64x64xf32, #tpu.memory_space<vmem>>, vector<1x64x64xf32>
    %11 = vector.shape_cast %10 : vector<1x64x64xf32> to vector<64x64xf32>
    %cst_11 = arith.constant dense<0.000000e+00> : vector<64x128xf32>
    %12 = tpu.matmul %11, %9, %cst_11 {dimension_numbers = #tpu.dot_dimension_numbers<[1], [0], [0], [1], [0, 0, 1, 1], [], []>} : vector<64x64xf32>, vector<64x128xf32>, vector<64x128xf32> -> vector<64x128xf32>
    %cst_12 = arith.constant 0.000000e+00 : f32
    %13 = vector.broadcast %cst_12 : f32 to vector<64x128xf32>
    %14 = arith.maximumf %12, %13 : vector<64x128xf32>
    %c2 = arith.constant 2 : index
    %c0_13 = arith.constant 0 : index
    %c0_14 = arith.constant 0 : index
    %15 = vector.load %arg3[%c2, %c0_13, %c0_14] : memref<4x64x64xf32, #tpu.memory_space<vmem>>, vector<1x64x64xf32>
    %16 = vector.shape_cast %15 : vector<1x64x64xf32> to vector<64x64xf32>
    %cst_15 = arith.constant dense<0.000000e+00> : vector<64x128xf32>
    %17 = tpu.matmul %16, %14, %cst_15 {dimension_numbers = #tpu.dot_dimension_numbers<[1], [0], [0], [1], [0, 0, 1, 1], [], []>} : vector<64x64xf32>, vector<64x128xf32>, vector<64x128xf32> -> vector<64x128xf32>
    %cst_16 = arith.constant 0.000000e+00 : f32
    %18 = vector.broadcast %cst_16 : f32 to vector<64x128xf32>
    %19 = arith.maximumf %17, %18 : vector<64x128xf32>
    %c3 = arith.constant 3 : index
    %c0_17 = arith.constant 0 : index
    %c0_18 = arith.constant 0 : index
    %20 = vector.load %arg3[%c3, %c0_17, %c0_18] : memref<4x64x64xf32, #tpu.memory_space<vmem>>, vector<1x64x64xf32>
    %21 = vector.shape_cast %20 : vector<1x64x64xf32> to vector<64x64xf32>
    %cst_19 = arith.constant dense<0.000000e+00> : vector<64x128xf32>
    %22 = tpu.matmul %21, %19, %cst_19 {dimension_numbers = #tpu.dot_dimension_numbers<[1], [0], [0], [1], [0, 0, 1, 1], [], []>} : vector<64x64xf32>, vector<64x128xf32>, vector<64x128xf32> -> vector<64x128xf32>
    %cst_20 = arith.constant 0.000000e+00 : f32
    %23 = vector.broadcast %cst_20 : f32 to vector<64x128xf32>
    %24 = arith.maximumf %22, %23 : vector<64x128xf32>
    %c0_21 = arith.constant 0 : index
    %c0_22 = arith.constant 0 : index
    %25 = vector.load %arg4[%c0_21, %c0_22] : memref<8x64xf32, #tpu.memory_space<vmem>>, vector<8x64xf32>
    %cst_23 = arith.constant dense<0.000000e+00> : vector<8x128xf32>
    %26 = tpu.matmul %25, %24, %cst_23 {dimension_numbers = #tpu.dot_dimension_numbers<[1], [0], [0], [1], [0, 0, 1, 1], [], []>} : vector<8x64xf32>, vector<64x128xf32>, vector<8x128xf32> -> vector<8x128xf32>
    %27 = vector.extract_strided_slice %26 {offsets = [4, 0], sizes = [1, 128], strides = [1, 1]} : vector<8x128xf32> to vector<1x128xf32>
    %28 = math.tanh %27 : vector<1x128xf32>
    %cst_24 = arith.constant 6.28318548 : f32
    %29 = vector.broadcast %cst_24 : f32 to vector<1x128xf32>
    %30 = arith.mulf %29, %28 : vector<1x128xf32>
    %31 = tpu.iota {dimensions = array<i32: 0>} : vector<8x128xi32>
    %c4_i32 = arith.constant 4 : i32
    %32 = vector.broadcast %c4_i32 : i32 to vector<8x128xi32>
    %33 = arith.cmpi eq, %31, %32 : vector<8x128xi32>
    %34 = vector.shape_cast %30 : vector<1x128xf32> to vector<1x128xf32>
    %35 = vector.broadcast %34 : vector<1x128xf32> to vector<8x128xf32>
    %36 = arith.select %33, %35, %26 : vector<8x128xi1>, vector<8x128xf32>
    %c0_25 = arith.constant 0 : index
    %c0_26 = arith.constant 0 : index
    %37 = vector.load %arg5[%c0_25, %c0_26] : memref<8x128xf32, #tpu.memory_space<vmem>>, vector<8x128xf32>
    tpu.vector_store %arg5[%c0_25, %c0_26], %36 {strides = array<i32>} : memref<8x128xf32, #tpu.memory_space<vmem>>, vector<8x128xf32>,
    return
  }
  func.func @transform_0(%arg0: i32) -> (i32, i32) {
    %c0_i32 = arith.constant 0 : i32
    %c0_i32_0 = arith.constant 0 : i32
    return %c0_i32, %arg0 : i32, i32
  }
  func.func @transform_1(%arg0: i32) -> (i32, i32) {
    %c0_i32 = arith.constant 0 : i32
    %c0_i32_0 = arith.constant 0 : i32
    %c0_i32_1 = arith.constant 0 : i32
    return %c0_i32, %c0_i32_0 : i32, i32
  }
  func.func @transform_2(%arg0: i32) -> (i32, i32, i32) {
    %c0_i32 = arith.constant 0 : i32
    %c0_i32_0 = arith.constant 0 : i32
    %c0_i32_1 = arith.constant 0 : i32
    %c0_i32_2 = arith.constant 0 : i32
    return %c0_i32, %c0_i32_0, %c0_i32_1 : i32, i32, i32
  }
  func.func @transform_3(%arg0: i32) -> (i32, i32) {
    %c0_i32 = arith.constant 0 : i32
    %c0_i32_0 = arith.constant 0 : i32
    %c0_i32_1 = arith.constant 0 : i32
    return %c0_i32, %c0_i32_0 : i32, i32
  }
  func.func @transform_4(%arg0: i32) -> (i32, i32) {
    %c0_i32 = arith.constant 0 : i32
    %c0_i32_0 = arith.constant 0 : i32
    return %c0_i32, %arg0 : i32, i32
  }
}

</mosaic_0001>

<llo_original>
// kernel: contact_net_forward.1
$region0: #{contact_net_forward.1}
  #allocation0 [shape = 'u32[]', space=smem, size = 0x4, offset = 0x4, fixed_abs, tag = 'smem constant byte address 0x4 - core index']
  #allocation1 [shape = 'u32[144,128]{1,0:T(1,128)}', space=vmem, size = 0x12000, scoped, tag = 'internal scratch']
  %s0 = inlined_call_operand.vmem [shape: f32[8,128], index: 0, kind: input, shape index: {}]
  %s1 = inlined_call_operand.vmem [shape: f32[64,8], index: 1, kind: input, shape index: {}]
  %s2 = inlined_call_operand.hbm [shape: f32[4,64,64], index: 2, kind: input, shape index: {}]
  %s3 = inlined_call_operand.vmem [shape: f32[8,64], index: 3, kind: input, shape index: {}]
  %s4 = inlined_call_operand.vmem [shape: f32[8,128], index: 4, kind: output, shape index: {}]
  %s5 = sld [smem:[#allocation0]]
  $region30: #{contact_net_forward.1} parent=0
    _
  %s7 = ssub.s32 1, %s5
  %s8 = scalar_select 0, %s7, %s5
  $region1: #{contact_net_forward.1} parent=0
    #allocation2 [shape = 'u8[131072]{0}', space=vmem, size = 0x20000, scoped, tag = 'input window, operand 2, single buffered']
    #allocation3 [shape = 's32[1]{0}', space=sflag, size = 0x4, scoped, tag = 'scoped memory for contact_net_forward.1']
    %9 = vsyncpa [#allocation3], 0
    // Predicated region
    $region2: #{contact_net_forward.1} parent=1 // pred_check
      _
    $region3: #{contact_net_forward.1} parent=1 // pred_check_branch
      %11 = sbr.rel (0) target = $region5
    $region4: #{contact_net_forward.1} parent=1 // pred_region
      _
    $region5: #{contact_net_forward.1} parent=1 // pred_fallthru
      _
    // Predicated region
    $region6: #{contact_net_forward.1} parent=1 // pred_check
      _
    $region7: #{contact_net_forward.1} parent=1 // pred_check_branch
      %13 = sbr.rel (0) target = $region9
    $region8: #{contact_net_forward.1} parent=1 // pred_region
      _
    $region9: #{contact_net_forward.1} parent=1 // pred_fallthru
      _
    // Predicated region
    $region10: #{contact_net_forward.1} parent=1 // pred_check
      _
    $region11: #{contact_net_forward.1} parent=1 // pred_check_branch
      %15 = sbr.rel (0) target = $region13
    $region12: #{contact_net_forward.1} parent=1 // pred_region
      %s17 = ssub.s32 4096, 4096
      %18 = vsyncadd [#allocation3], %s17
      %s19 = sshll.u32 [#allocation2], 4
      %s20 = int_to_ptr.vmem [resolvable:$true] %s19
      %25 = dma.hbm_to_vmem [thread:$0]  %s2, 4096, %s20, [#allocation3], 128, 128, 8
    $region13: #{contact_net_forward.1} parent=1 // pred_fallthru
      _
    // Predicated region
    $region14: #{contact_net_forward.1} parent=1 // pred_check
      _
    $region15: #{contact_net_forward.1} parent=1 // pred_check_branch
      %27 = sbr.rel (0) target = $region17
    $region16: #{contact_net_forward.1} parent=1 // pred_region
      _
    $region17: #{contact_net_forward.1} parent=1 // pred_fallthru
      _
    // Predicated region
    $region18: #{contact_net_forward.1} parent=1 // pred_check
      _
    $region19: #{contact_net_forward.1} parent=1 // pred_check_branch
      %29 = sbr.rel (0) target = $region21
    $region20: #{contact_net_forward.1} parent=1 // pred_region
      %30 = dma.done [#allocation3], 4096
    $region21: #{contact_net_forward.1} parent=1 // pred_fallthru
      _
    %v31 = vld [vmem:[%s1] sm:$0xff]
    %v32 = vld [vmem:[%s1 + $0x8] sm:$0xff]
    %v33 = vld [vmem:[%s1 + $0x10] sm:$0xff]
    %v34 = vld [vmem:[%s1 + $0x18] sm:$0xff]
    %v35 = vld [vmem:[%s1 + $0x20] sm:$0xff]
    %v36 = vld [vmem:[%s1 + $0x28] sm:$0xff]
    %v37 = vld [vmem:[%s1 + $0x30] sm:$0xff]
    %v38 = vld [vmem:[%s1 + $0x38] sm:$0xff]
    %v39 = vld [vmem:[%s0] sm:$0xff]
    %vm40 = vcmask 64512
    %v42 = vsel %vm40, %v31, 0
    %v45 = vsel %vm40, %v32, 0
    %v48 = vsel %vm40, %v33, 0
    %v51 = vsel %vm40, %v34, 0
    %v54 = vsel %vm40, %v35, 0
    %v57 = vsel %vm40, %v36, 0
    %v60 = vsel %vm40, %v37, 0
    %v63 = vsel %vm40, %v38, 0
    %65 = vmatprep.subr.mxu0 0.0
    %66 = vmatpush1.msra.mxu0 %v39
    %67 = vmatprep.subr.mxu0 0.0
    %68 = vmatpush1.msra.mxu0 0.0
    %69 = vmatprep.subr.mxu0 0.0
    %70 = vmatpush1.msra.mxu0 0.0
    %71 = vmatprep.subr.mxu0 0.0
    %72 = vmatpush1.msra.mxu0 0.0
    %73 = vmatprep.subr.mxu0 0.0
    %74 = vmatpush1.msra.mxu0 0.0
    %75 = vmatprep.subr.mxu0 0.0
    %76 = vmatpush1.msra.mxu0 0.0
    %77 = vmatprep.subr.mxu0 0.0
    %78 = vmatpush1.msra.mxu0 0.0
    %79 = vmatprep.subr.mxu0 0.0
    %80 = vmatpush1.msra.mxu0 0.0
    %81 = vmatprep.subr.mxu0 0.0
    %82 = vmatpush1.msra.mxu0 0.0
    %83 = vmatprep.subr.mxu0 0.0
    %84 = vmatpush1.msra.mxu0 0.0
    %85 = vmatprep.subr.mxu0 0.0
    %86 = vmatpush1.msra.mxu0 0.0
    %87 = vmatprep.subr.mxu0 0.0
    %88 = vmatpush1.msra.mxu0 0.0
    %89 = vmatprep.subr.mxu0 0.0
    %90 = vmatpush1.msra.mxu0 0.0
    %91 = vmatprep.subr.mxu0 0.0
    %92 = vmatpush1.msra.mxu0 0.0
    %93 = vmatprep.subr.mxu0 0.0
    %94 = vmatpush1.msra.mxu0 0.0
    %95 = vmatprep.subr.mxu0 0.0
    %96 = vmatpush1.msra.mxu0 0.0
    %97 = vmatprep.subr.mxu0 0.0
    %98 = vmatpush1.msra.mxu0 0.0
    %99 = vmatprep.subr.mxu0 0.0
    %100 = vmatpush1.msra.mxu0 0.0
    %101 = vmatprep.subr.mxu0 0.0
    %102 = vmatpush1.msra.mxu0 0.0
    %103 = vmatprep.subr.mxu0 0.0
    %104 = vmatpush1.msra.mxu0 0.0
    %105 = vmatprep.subr.mxu0 0.0
    %106 = vmatpush1.msra.mxu0 0.0
    %107 = vmatprep.subr.mxu0 0.0
    %108 = vmatpush1.msra.mxu0 0.0
    %109 = vmatprep.subr.mxu0 0.0
    %110 = vmatpush1.msra.mxu0 0.0
    %111 = vmatprep.subr.mxu0 0.0
    %112 = vmatpush1.msra.mxu0 0.0
    %113 = vmatprep.subr.mxu0 0.0
    %114 = vmatpush1.msra.mxu0 0.0
    %115 = vmatprep.subr.mxu0 0.0
    %116 = vmatpush1.msra.mxu0 0.0
    %117 = vmatprep.subr.mxu0 0.0
    %118 = vmatpush1.msra.mxu0 0.0
    %119 = vmatprep.subr.mxu0 0.0
    %120 = vmatpush1.msra.mxu0 0.0
    %121 = vmatprep.subr.mxu0 0.0
    %122 = vmatpush1.msra.mxu0 0.0
    %123 = vmatprep.subr.mxu0 0.0
    %124 = vmatpush1.msra.mxu0 0.0
    %125 = vmatprep.subr.mxu0 0.0
    %126 = vmatpush1.msra.mxu0 0.0
    %127 = vmatprep.subr.mxu0 0.0
    %128 = vmatpush1.msra.mxu0 0.0
    %129 = vmatprep.mubr.f32.mxu0 0.0
    %130 = vmatmul.mubr.f32.gmra.mrb[0].mxu0 %v42
    %v131 = vpop.f32.mrb[0].mxu0
    %v132 = vadd.f32 0.0, %v131
    %v133 = vpop.f32.mrb[0].mxu0
    %134 = vmatprep.mubr.f32.mxu0 0.0
    %135 = vmatmul.mubr.f32.gmra.mrb[0].mxu0 %v45
    %v136 = vpop.f32.mrb[0].mxu0
    %v137 = vadd.f32 0.0, %v136
    %v138 = vpop.f32.mrb[0].mxu0
    %139 = vmatprep.mubr.f32.mxu0 0.0
    %140 = vmatmul.mubr.f32.gmra.mrb[0].mxu0 %v48
    %v141 = vpop.f32.mrb[0].mxu0
    %v142 = vadd.f32 0.0, %v141
    %v143 = vpop.f32.mrb[0].mxu0
    %144 = vmatprep.mubr.f32.mxu0 0.0
    %145 = vmatmul.mubr.f32.gmra.mrb[0].mxu0 %v51
    %v146 = vpop.f32.mrb[0].mxu0
    %v147 = vadd.f32 0.0, %v146
    %v148 = vpop.f32.mrb[0].mxu0
    %149 = vmatprep.mubr.f32.mxu0 0.0
    %150 = vmatmul.mubr.f32.gmra.mrb[0].mxu0 %v54
    %v151 = vpop.f32.mrb[0].mxu0
    %v152 = vadd.f32 0.0, %v151
    %v153 = vpop.f32.mrb[0].mxu0
    %154 = vmatprep.mubr.f32.mxu0 0.0
    %155 = vmatmul.mubr.f32.gmra.mrb[0].mxu0 %v57
    %v156 = vpop.f32.mrb[0].mxu0
    %v157 = vadd.f32 0.0, %v156
    %v158 = vpop.f32.mrb[0].mxu0
    %159 = vmatprep.mubr.f32.mxu0 0.0
    %160 = vmatmul.mubr.f32.gmra.mrb[0].mxu0 %v60
    %v161 = vpop.f32.mrb[0].mxu0
    %v162 = vadd.f32 0.0, %v161
    %v163 = vpop.f32.mrb[0].mxu0
    %164 = vmatprep.mubr.f32.mxu0 0.0
    %165 = vmatmul.mubr.f32.gmra.mrb[0].mxu0 %v63
    %v166 = vpop.f32.mrb[0].mxu0
    %v167 = vadd.f32 0.0, %v166
    %v168 = vpop.f32.mrb[0].mxu0
    %169 = vdwg.mxu0
    %v170 = vmax.f32 %v132, 0.0
    %v171 = vmax.f32 %v137, 0.0
    %v172 = vmax.f32 %v142, 0.0
    %v173 = vmax.f32 %v147, 0.0
    %v174 = vmax.f32 %v152, 0.0
    %v175 = vmax.f32 %v157, 0.0
    %v176 = vmax.f32 %v162, 0.0
    %v177 = vmax.f32 %v167, 0.0
    %v178 = vld [vmem:[#allocation2] sm:$0xff]
    %v179 = vld [vmem:[#allocation2 + $0x8] sm:$0xff]
    %v180 = vld [vmem:[#allocation2 + $0x10] sm:$0xff]
    %v181 = vld [vmem:[#allocation2 + $0x18] sm:$0xff]
    %v182 = vld [vmem:[#allocation2 + $0x20] sm:$0xff]
    %v183 = vld [vmem:[#allocation2 + $0x28] sm:$0xff]
    %v184 = vld [vmem:[#allocation2 + $0x30] sm:$0xff]
    %v185 = vld [vmem:[#allocation2 + $0x38] sm:$0xff]
    %vm186 = vcmask 523264
    %v188 = vsel %vm186, %v178, 0
    %v191 = vsel %vm186, %v179, 0
    %v194 = vsel %vm186, %v180, 0
    %v197 = vsel %vm186, %v181, 0
    %v200 = vsel %vm186, %v182, 0
    %v203 = vsel %vm186, %v183, 0
    %v206 = vsel %vm186, %v184, 0
    %v209 = vsel %vm186, %v185, 0
    %211 = vmatprep.subr.mxu0 0.0
    %212 = vmatpush1.msra.mxu0 %v170
    %213 = vmatprep.subr.mxu0 0.0
    %214 = vmatpush1.msra.mxu0 %v171
    %215 = vmatprep.subr.mxu0 0.0
    %216 = vmatpush1.msra.mxu0 %v172
    %217 = vmatprep.subr.mxu0 0.0
    %218 = vmatpush1.msra.mxu0 %v173
    %219 = vmatprep.subr.mxu0 0.0
    %220 = vmatpush1.msra.mxu0 %v174
    %221 = vmatprep.subr.mxu0 0.0
    %222 = vmatpush1.msra.mxu0 %v175
    %223 = vmatprep.subr.mxu0 0.0
    %224 = vmatpush1.msra.mxu0 %v176
    %225 = vmatprep.subr.mxu0 0.0
    %226 = vmatpush1.msra.mxu0 %v177
    %227 = vmatprep.subr.mxu0 0.0
    %228 = vmatpush1.msra.mxu0 0.0
    %229 = vmatprep.subr.mxu0 0.0
    %230 = vmatpush1.msra.mxu0 0.0
    %231 = vmatprep.subr.mxu0 0.0
    %232 = vmatpush1.msra.mxu0 0.0
    %233 = vmatprep.subr.mxu0 0.0
    %234 = vmatpush1.msra.mxu0 0.0
    %235 = vmatprep.subr.mxu0 0.0
    %236 = vmatpush1.msra.mxu0 0.0
    %237 = vmatprep.subr.mxu0 0.0
    %238 = vmatpush1.msra.mxu0 0.0
    %239 = vmatprep.subr.mxu0 0.0
    %240 = vmatpush1.msra.mxu0 0.0
    %241 = vmatprep.subr.mxu0 0.0
    %242 = vmatpush1.msra.mxu0 0.0
    %243 = vmatprep.subr.mxu0 0.0
    %244 = vmatpush1.msra.mxu0 0.0
    %245 = vmatprep.subr.mxu0 0.0
    %246 = vmatpush1.msra.mxu0 0.0
    %247 = vmatprep.subr.mxu0 0.0
    %248 = vmatpush1.msra.mxu0 0.0
    %249 = vmatprep.subr.mxu0 0.0
    %250 = vmatpush1.msra.mxu0 0.0
    %251 = vmatprep.subr.mxu0 0.0
    %252 = vmatpush1.msra.mxu0 0.0
    %253 = vmatprep.subr.mxu0 0.0
    %254 = vmatpush1.msra.mxu0 0.0
    %255 = vmatprep.subr.mxu0 0.0
    %256 = vmatpush1.msra.mxu0 0.0
    %257 = vmatprep.subr.mxu0 0.0
    %258 = vmatpush1.msra.mxu0 0.0
    %259 = vmatprep.subr.mxu0 0.0
    %260 = vmatpush1.msra.mxu0 0.0
    %261 = vmatprep.subr.mxu0 0.0
    %262 = vmatpush1.msra.mxu0 0.0
    %263 = vmatprep.subr.mxu0 0.0
    %264 = vmatpush1.msra.mxu0 0.0
    %265 = vmatprep.subr.mxu0 0.0
    %266 = vmatpush1.msra.mxu0 0.0
    %267 = vmatprep.subr.mxu0 0.0
    %268 = vmatpush1.msra.mxu0 0.0
    %269 = vmatprep.subr.mxu0 0.0
    %270 = vmatpush1.msra.mxu0 0.0
    %271 = vmatprep.subr.mxu0 0.0
    %272 = vmatpush1.msra.mxu0 0.0
    %273 = vmatprep.subr.mxu0 0.0
    %274 = vmatpush1.msra.mxu0 0.0
    %275 = vmatprep.mubr.f32.mxu0 0.0
    %276 = vmatmul.mubr.f32.gmra.mrb[0].mxu0 %v188
    %v277 = vpop.f32.mrb[0].mxu0
    %v278 = vadd.f32 0.0, %v277
    %v279 = vpop.f32.mrb[0].mxu0
    %280 = vmatprep.mubr.f32.mxu0 0.0
    %281 = vmatmul.mubr.f32.gmra.mrb[0].mxu0 %v191
    %v282 = vpop.f32.mrb[0].mxu0
    %v283 = vadd.f32 0.0, %v282
    %v284 = vpop.f32.mrb[0].mxu0
    %285 = vmatprep.mubr.f32.mxu0 0.0
    %286 = vmatmul.mubr.f32.gmra.mrb[0].mxu0 %v194
    %v287 = vpop.f32.mrb[0].mxu0
    %v288 = vadd.f32 0.0, %v287
    %v289 = vpop.f32.mrb[0].mxu0
    %290 = vmatprep.mubr.f32.mxu0 0.0
    %291 = vmatmul.mubr.f32.gmra.mrb[0].mxu0 %v197
    %v292 = vpop.f32.mrb[0].mxu0
    %v293 = vadd.f32 0.0, %v292
    %v294 = vpop.f32.mrb[0].mxu0
    %295 = vmatprep.mubr.f32.mxu0 0.0
    %296 = vmatmul.mubr.f32.gmra.mrb[0].mxu0 %v200
    %v297 = vpop.f32.mrb[0].mxu0
    %v298 = vadd.f32 0.0, %v297
    %v299 = vpop.f32.mrb[0].mxu0
    %300 = vmatprep.mubr.f32.mxu0 0.0
    %301 = vmatmul.mubr.f32.gmra.mrb[0].mxu0 %v203
    %v302 = vpop.f32.mrb[0].mxu0
    %v303 = vadd.f32 0.0, %v302
    %v304 = vpop.f32.mrb[0].mxu0
    %305 = vmatprep.mubr.f32.mxu0 0.0
    %306 = vmatmul.mubr.f32.gmra.mrb[0].mxu0 %v206
    %v307 = vpop.f32.mrb[0].mxu0
    %v308 = vadd.f32 0.0, %v307
    %v309 = vpop.f32.mrb[0].mxu0
    %310 = vmatprep.mubr.f32.mxu0 0.0
    %311 = vmatmul.mubr.f32.gmra.mrb[0].mxu0 %v209
    %v312 = vpop.f32.mrb[0].mxu0
    %v313 = vadd.f32 0.0, %v312
    %v314 = vpop.f32.mrb[0].mxu0
    %315 = vdwg.mxu0
    %v316 = vmax.f32 %v278, 0.0
    %v317 = vmax.f32 %v283, 0.0
    %v318 = vmax.f32 %v288, 0.0
    %v319 = vmax.f32 %v293, 0.0
    %v320 = vmax.f32 %v298, 0.0
    %v321 = vmax.f32 %v303, 0.0
    %v322 = vmax.f32 %v308, 0.0
    %v323 = vmax.f32 %v313, 0.0
    %s324 = scalar_lea.vmem [#allocation2], 64
    %v325 = vld [vmem:[%s324] sm:$0xff]
    %v326 = vld [vmem:[%s324 + $0x8] sm:$0xff]
    %v327 = vld [vmem:[%s324 + $0x10] sm:$0xff]
    %v328 = vld [vmem:[%s324 + $0x18] sm:$0xff]
    %v329 = vld [vmem:[%s324 + $0x20] sm:$0xff]
    %v330 = vld [vmem:[%s324 + $0x28] sm:$0xff]
    %v331 = vld [vmem:[%s324 + $0x30] sm:$0xff]
    %v332 = vld [vmem:[%s324 + $0x38] sm:$0xff]
    %v334 = vsel %vm186, %v325, 0
    %v337 = vsel %vm186, %v326, 0
    %v340 = vsel %vm186, %v327, 0
    %v343 = vsel %vm186, %v328, 0
    %v346 = vsel %vm186, %v329, 0
    %v349 = vsel %vm186, %v330, 0
    %v352 = vsel %vm186, %v331, 0
    %v355 = vsel %vm186, %v332, 0
    %357 = vmatprep.subr.mxu0 0.0
    %358 = vmatpush1.msra.mxu0 %v316
    %359 = vmatprep.subr.mxu0 0.0
    %360 = vmatpush1.msra.mxu0 %v317
    %361 = vmatprep.subr.mxu0 0.0
    %362 = vmatpush1.msra.mxu0 %v318
    %363 = vmatprep.subr.mxu0 0.0
    %364 = vmatpush1.msra.mxu0 %v319
    %365 = vmatprep.subr.mxu0 0.0
    %366 = vmatpush1.msra.mxu0 %v320
    %367 = vmatprep.subr.mxu0 0.0
    %368 = vmatpush1.msra.mxu0 %v321
    %369 = vmatprep.subr.mxu0 0.0
    %370 = vmatpush1.msra.mxu0 %v322
    %371 = vmatprep.subr.mxu0 0.0
    %372 = vmatpush1.msra.mxu0 %v323
    %373 = vmatprep.subr.mxu0 0.0
    %374 = vmatpush1.msra.mxu0 0.0
    %375 = vmatprep.subr.mxu0 0.0
    %376 = vmatpush1.msra.mxu0 0.0
    %377 = vmatprep.subr.mxu0 0.0
    %378 = vmatpush1.msra.mxu0 0.0
    %379 = vmatprep.subr.mxu0 0.0
    %380 = vmatpush1.msra.mxu0 0.0
    %381 = vmatprep.subr.mxu0 0.0
    %382 = vmatpush1.msra.mxu0 0.0
    %383 = vmatprep.subr.mxu0 0.0
    %384 = vmatpush1.msra.mxu0 0.0
    %385 = vmatprep.subr.mxu0 0.0
    %386 = vmatpush1.msra.mxu0 0.0
    %387 = vmatprep.subr.mxu0 0.0
    %388 = vmatpush1.msra.mxu0 0.0
    %389 = vmatprep.subr.mxu0 0.0
    %390 = vmatpush1.msra.mxu0 0.0
    %391 = vmatprep.subr.mxu0 0.0
    %392 = vmatpush1.msra.mxu0 0.0
    %393 = vmatprep.subr.mxu0 0.0
    %394 = vmatpush1.msra.mxu0 0.0
    %395 = vmatprep.subr.mxu0 0.0
    %396 = vmatpush1.msra.mxu0 0.0
    %397 = vmatprep.subr.mxu0 0.0
    %398 = vmatpush1.msra.mxu0 0.0
    %399 = vmatprep.subr.mxu0 0.0
    %400 = vmatpush1.msra.mxu0 0.0
    %401 = vmatprep.subr.mxu0 0.0
    %402 = vmatpush1.msra.mxu0 0.0
    %403 = vmatprep.subr.mxu0 0.0
    %404 = vmatpush1.msra.mxu0 0.0
    %405 = vmatprep.subr.mxu0 0.0
    %406 = vmatpush1.msra.mxu0 0.0
    %407 = vmatprep.subr.mxu0 0.0
    %408 = vmatpush1.msra.mxu0 0.0
    %409 = vmatprep.subr.mxu0 0.0
    %410 = vmatpush1.msra.mxu0 0.0
    %411 = vmatprep.subr.mxu0 0.0
    %412 = vmatpush1.msra.mxu0 0.0
    %413 = vmatprep.subr.mxu0 0.0
    %414 = vmatpush1.msra.mxu0 0.0
    %415 = vmatprep.subr.mxu0 0.0
    %416 = vmatpush1.msra.mxu0 0.0
    %417 = vmatprep.subr.mxu0 0.0
    %418 = vmatpush1.msra.mxu0 0.0
    %419 = vmatprep.subr.mxu0 0.0
    %420 = vmatpush1.msra.mxu0 0.0
    %421 = vmatprep.mubr.f32.mxu0 0.0
    %422 = vmatmul.mubr.f32.gmra.mrb[0].mxu0 %v334
    %v423 = vpop.f32.mrb[0].mxu0
    %v424 = vadd.f32 0.0, %v423
    %v425 = vpop.f32.mrb[0].mxu0
    %426 = vmatprep.mubr.f32.mxu0 0.0
    %427 = vmatmul.mubr.f32.gmra.mrb[0].mxu0 %v337
    %v428 = vpop.f32.mrb[0].mxu0
    %v429 = vadd.f32 0.0, %v428
    %v430 = vpop.f32.mrb[0].mxu0
    %431 = vmatprep.mubr.f32.mxu0 0.0
    %432 = vmatmul.mubr.f32.gmra.mrb[0].mxu0 %v340
    %v433 = vpop.f32.mrb[0].mxu0
    %v434 = vadd.f32 0.0, %v433
    %v435 = vpop.f32.mrb[0].mxu0
    %436 = vmatprep.mubr.f32.mxu0 0.0
    %437 = vmatmul.mubr.f32.gmra.mrb[0].mxu0 %v343
    %v438 = vpop.f32.mrb[0].mxu0
    %v439 = vadd.f32 0.0, %v438
    %v440 = vpop.f32.mrb[0].mxu0
    %441 = vmatprep.mubr.f32.mxu0 0.0
    %442 = vmatmul.mubr.f32.gmra.mrb[0].mxu0 %v346
    %v443 = vpop.f32.mrb[0].mxu0
    %v444 = vadd.f32 0.0, %v443
    %v445 = vpop.f32.mrb[0].mxu0
    %446 = vmatprep.mubr.f32.mxu0 0.0
    %447 = vmatmul.mubr.f32.gmra.mrb[0].mxu0 %v349
    %v448 = vpop.f32.mrb[0].mxu0
    %v449 = vadd.f32 0.0, %v448
    %v450 = vpop.f32.mrb[0].mxu0
    %451 = vmatprep.mubr.f32.mxu0 0.0
    %452 = vmatmul.mubr.f32.gmra.mrb[0].mxu0 %v352
    %v453 = vpop.f32.mrb[0].mxu0
    %v454 = vadd.f32 0.0, %v453
    %v455 = vpop.f32.mrb[0].mxu0
    %456 = vmatprep.mubr.f32.mxu0 0.0
    %457 = vmatmul.mubr.f32.gmra.mrb[0].mxu0 %v355
    %v458 = vpop.f32.mrb[0].mxu0
    %v459 = vadd.f32 0.0, %v458
    %v460 = vpop.f32.mrb[0].mxu0
    %461 = vdwg.mxu0
    %v462 = vmax.f32 %v424, 0.0
    %v463 = vmax.f32 %v429, 0.0
    %v464 = vmax.f32 %v434, 0.0
    %v465 = vmax.f32 %v439, 0.0
    %v466 = vmax.f32 %v444, 0.0
    %v467 = vmax.f32 %v449, 0.0
    %v468 = vmax.f32 %v454, 0.0
    %v469 = vmax.f32 %v459, 0.0
    %s470 = scalar_lea.vmem [#allocation2], 128
    %v471 = vld [vmem:[%s470] sm:$0xff]
    %v472 = vld [vmem:[%s470 + $0x8] sm:$0xff]
    %v473 = vld [vmem:[%s470 + $0x10] sm:$0xff]
    %v474 = vld [vmem:[%s470 + $0x18] sm:$0xff]
    %v475 = vld [vmem:[%s470 + $0x20] sm:$0xff]
    %v476 = vld [vmem:[%s470 + $0x28] sm:$0xff]
    %v477 = vld [vmem:[%s470 + $0x30] sm:$0xff]
    %v478 = vld [vmem:[%s470 + $0x38] sm:$0xff]
    %v480 = vsel %vm186, %v471, 0
    %v483 = vsel %vm186, %v472, 0
    %v486 = vsel %vm186, %v473, 0
    %v489 = vsel %vm186, %v474, 0
    %v492 = vsel %vm186, %v475, 0
    %v495 = vsel %vm186, %v476, 0
    %v498 = vsel %vm186, %v477, 0
    %v501 = vsel %vm186, %v478, 0
    %503 = vmatprep.subr.mxu0 0.0
    %504 = vmatpush1.msra.mxu0 %v462
    %505 = vmatprep.subr.mxu0 0.0
    %506 = vmatpush1.msra.mxu0 %v463
    %507 = vmatprep.subr.mxu0 0.0
    %508 = vmatpush1.msra.mxu0 %v464
    %509 = vmatprep.subr.mxu0 0.0
    %510 = vmatpush1.msra.mxu0 %v465
    %511 = vmatprep.subr.mxu0 0.0
    %512 = vmatpush1.msra.mxu0 %v466
    %513 = vmatprep.subr.mxu0 0.0
    %514 = vmatpush1.msra.mxu0 %v467
    %515 = vmatprep.subr.mxu0 0.0
    %516 = vmatpush1.msra.mxu0 %v468
    %517 = vmatprep.subr.mxu0 0.0
    %518 = vmatpush1.msra.mxu0 %v469
    %519 = vmatprep.subr.mxu0 0.0
    %520 = vmatpush1.msra.mxu0 0.0
    %521 = vmatprep.subr.mxu0 0.0
    %522 = vmatpush1.msra.mxu0 0.0
    %523 = vmatprep.subr.mxu0 0.0
    %524 = vmatpush1.msra.mxu0 0.0
    %525 = vmatprep.subr.mxu0 0.0
    %526 = vmatpush1.msra.mxu0 0.0
    %527 = vmatprep.subr.mxu0 0.0
    %528 = vmatpush1.msra.mxu0 0.0
    %529 = vmatprep.subr.mxu0 0.0
    %530 = vmatpush1.msra.mxu0 0.0
    %531 = vmatprep.subr.mxu0 0.0
    %532 = vmatpush1.msra.mxu0 0.0
    %533 = vmatprep.subr.mxu0 0.0
    %534 = vmatpush1.msra.mxu0 0.0
    %535 = vmatprep.subr.mxu0 0.0
    %536 = vmatpush1.msra.mxu0 0.0
    %537 = vmatprep.subr.mxu0 0.0
    %538 = vmatpush1.msra.mxu0 0.0
    %539 = vmatprep.subr.mxu0 0.0
    %540 = vmatpush1.msra.mxu0 0.0
    %541 = vmatprep.subr.mxu0 0.0
    %542 = vmatpush1.msra.mxu0 0.0
    %543 = vmatprep.subr.mxu0 0.0
    %544 = vmatpush1.msra.mxu0 0.0
    %545 = vmatprep.subr.mxu0 0.0
    %546 = vmatpush1.msra.mxu0 0.0
    %547 = vmatprep.subr.mxu0 0.0
    %548 = vmatpush1.msra.mxu0 0.0
    %549 = vmatprep.subr.mxu0 0.0
    %550 = vmatpush1.msra.mxu0 0.0
    %551 = vmatprep.subr.mxu0 0.0
    %552 = vmatpush1.msra.mxu0 0.0
    %553 = vmatprep.subr.mxu0 0.0
    %554 = vmatpush1.msra.mxu0 0.0
    %555 = vmatprep.subr.mxu0 0.0
    %556 = vmatpush1.msra.mxu0 0.0
    %557 = vmatprep.subr.mxu0 0.0
    %558 = vmatpush1.msra.mxu0 0.0
    %559 = vmatprep.subr.mxu0 0.0
    %560 = vmatpush1.msra.mxu0 0.0
    %561 = vmatprep.subr.mxu0 0.0
    %562 = vmatpush1.msra.mxu0 0.0
    %563 = vmatprep.subr.mxu0 0.0
    %564 = vmatpush1.msra.mxu0 0.0
    %565 = vmatprep.subr.mxu0 0.0
    %566 = vmatpush1.msra.mxu0 0.0
    %567 = vmatprep.mubr.f32.mxu0 0.0
    %568 = vmatmul.mubr.f32.gmra.mrb[0].mxu0 %v480
    %v569 = vpop.f32.mrb[0].mxu0
    %v570 = vadd.f32 0.0, %v569
    %v571 = vpop.f32.mrb[0].mxu0
    %572 = vmatprep.mubr.f32.mxu0 0.0
    %573 = vmatmul.mubr.f32.gmra.mrb[0].mxu0 %v483
    %v574 = vpop.f32.mrb[0].mxu0
    %v575 = vadd.f32 0.0, %v574
    %v576 = vpop.f32.mrb[0].mxu0
    %577 = vmatprep.mubr.f32.mxu0 0.0
    %578 = vmatmul.mubr.f32.gmra.mrb[0].mxu0 %v486
    %v579 = vpop.f32.mrb[0].mxu0
    %v580 = vadd.f32 0.0, %v579
    %v581 = vpop.f32.mrb[0].mxu0
    %582 = vmatprep.mubr.f32.mxu0 0.0
    %583 = vmatmul.mubr.f32.gmra.mrb[0].mxu0 %v489
    %v584 = vpop.f32.mrb[0].mxu0
    %v585 = vadd.f32 0.0, %v584
    %v586 = vpop.f32.mrb[0].mxu0
    %587 = vmatprep.mubr.f32.mxu0 0.0
    %588 = vmatmul.mubr.f32.gmra.mrb[0].mxu0 %v492
    %v589 = vpop.f32.mrb[0].mxu0
    %v590 = vadd.f32 0.0, %v589
    %v591 = vpop.f32.mrb[0].mxu0
    %592 = vmatprep.mubr.f32.mxu0 0.0
    %593 = vmatmul.mubr.f32.gmra.mrb[0].mxu0 %v495
    %v594 = vpop.f32.mrb[0].mxu0
    %v595 = vadd.f32 0.0, %v594
    %v596 = vpop.f32.mrb[0].mxu0
    %597 = vmatprep.mubr.f32.mxu0 0.0
    %598 = vmatmul.mubr.f32.gmra.mrb[0].mxu0 %v498
    %v599 = vpop.f32.mrb[0].mxu0
    %v600 = vadd.f32 0.0, %v599
    %v601 = vpop.f32.mrb[0].mxu0
    %602 = vmatprep.mubr.f32.mxu0 0.0
    %603 = vmatmul.mubr.f32.gmra.mrb[0].mxu0 %v501
    %v604 = vpop.f32.mrb[0].mxu0
    %v605 = vadd.f32 0.0, %v604
    %v606 = vpop.f32.mrb[0].mxu0
    %607 = vdwg.mxu0
    %v608 = vmax.f32 %v570, 0.0
    %v609 = vmax.f32 %v575, 0.0
    %v610 = vmax.f32 %v580, 0.0
    %v611 = vmax.f32 %v585, 0.0
    %v612 = vmax.f32 %v590, 0.0
    %v613 = vmax.f32 %v595, 0.0
    %v614 = vmax.f32 %v600, 0.0
    %v615 = vmax.f32 %v605, 0.0
    %s616 = scalar_lea.vmem [#allocation2], 192
    %v617 = vld [vmem:[%s616] sm:$0xff]
    %v618 = vld [vmem:[%s616 + $0x8] sm:$0xff]
    %v619 = vld [vmem:[%s616 + $0x10] sm:$0xff]
    %v620 = vld [vmem:[%s616 + $0x18] sm:$0xff]
    %v621 = vld [vmem:[%s616 + $0x20] sm:$0xff]
    %v622 = vld [vmem:[%s616 + $0x28] sm:$0xff]
    %v623 = vld [vmem:[%s616 + $0x30] sm:$0xff]
    %v624 = vld [vmem:[%s616 + $0x38] sm:$0xff]
    %v626 = vsel %vm186, %v617, 0
    %v629 = vsel %vm186, %v618, 0
    %v632 = vsel %vm186, %v619, 0
    %v635 = vsel %vm186, %v620, 0
    %v638 = vsel %vm186, %v621, 0
    %v641 = vsel %vm186, %v622, 0
    %v644 = vsel %vm186, %v623, 0
    %v647 = vsel %vm186, %v624, 0
    %649 = vmatprep.subr.mxu0 0.0
    %650 = vmatpush1.msra.mxu0 %v608
    %651 = vmatprep.subr.mxu0 0.0
    %652 = vmatpush1.msra.mxu0 %v609
    %653 = vmatprep.subr.mxu0 0.0
    %654 = vmatpush1.msra.mxu0 %v610
    %655 = vmatprep.subr.mxu0 0.0
    %656 = vmatpush1.msra.mxu0 %v611
    %657 = vmatprep.subr.mxu0 0.0
    %658 = vmatpush1.msra.mxu0 %v612
    %659 = vmatprep.subr.mxu0 0.0
    %660 = vmatpush1.msra.mxu0 %v613
    %661 = vmatprep.subr.mxu0 0.0
    %662 = vmatpush1.msra.mxu0 %v614
    %663 = vmatprep.subr.mxu0 0.0
    %664 = vmatpush1.msra.mxu0 %v615
    %665 = vmatprep.subr.mxu0 0.0
    %666 = vmatpush1.msra.mxu0 0.0
    %667 = vmatprep.subr.mxu0 0.0
    %668 = vmatpush1.msra.mxu0 0.0
    %669 = vmatprep.subr.mxu0 0.0
    %670 = vmatpush1.msra.mxu0 0.0
    %671 = vmatprep.subr.mxu0 0.0
    %672 = vmatpush1.msra.mxu0 0.0
    %673 = vmatprep.subr.mxu0 0.0
    %674 = vmatpush1.msra.mxu0 0.0
    %675 = vmatprep.subr.mxu0 0.0
    %676 = vmatpush1.msra.mxu0 0.0
    %677 = vmatprep.subr.mxu0 0.0
    %678 = vmatpush1.msra.mxu0 0.0
    %679 = vmatprep.subr.mxu0 0.0
    %680 = vmatpush1.msra.mxu0 0.0
    %681 = vmatprep.subr.mxu0 0.0
    %682 = vmatpush1.msra.mxu0 0.0
    %683 = vmatprep.subr.mxu0 0.0
    %684 = vmatpush1.msra.mxu0 0.0
    %685 = vmatprep.subr.mxu0 0.0
    %686 = vmatpush1.msra.mxu0 0.0
    %687 = vmatprep.subr.mxu0 0.0
    %688 = vmatpush1.msra.mxu0 0.0
    %689 = vmatprep.subr.mxu0 0.0
    %690 = vmatpush1.msra.mxu0 0.0
    %691 = vmatprep.subr.mxu0 0.0
    %692 = vmatpush1.msra.mxu0 0.0
    %693 = vmatprep.subr.mxu0 0.0
    %694 = vmatpush1.msra.mxu0 0.0
    %695 = vmatprep.subr.mxu0 0.0
    %696 = vmatpush1.msra.mxu0 0.0
    %697 = vmatprep.subr.mxu0 0.0
    %698 = vmatpush1.msra.mxu0 0.0
    %699 = vmatprep.subr.mxu0 0.0
    %700 = vmatpush1.msra.mxu0 0.0
    %701 = vmatprep.subr.mxu0 0.0
    %702 = vmatpush1.msra.mxu0 0.0
    %703 = vmatprep.subr.mxu0 0.0
    %704 = vmatpush1.msra.mxu0 0.0
    %705 = vmatprep.subr.mxu0 0.0
    %706 = vmatpush1.msra.mxu0 0.0
    %707 = vmatprep.subr.mxu0 0.0
    %708 = vmatpush1.msra.mxu0 0.0
    %709 = vmatprep.subr.mxu0 0.0
    %710 = vmatpush1.msra.mxu0 0.0
    %711 = vmatprep.subr.mxu0 0.0
    %712 = vmatpush1.msra.mxu0 0.0
    %713 = vmatprep.mubr.f32.mxu0 0.0
    %714 = vmatmul.mubr.f32.gmra.mrb[0].mxu0 %v626
    %v715 = vpop.f32.mrb[0].mxu0
    %v716 = vadd.f32 0.0, %v715
    %v717 = vpop.f32.mrb[0].mxu0
    %718 = vmatprep.mubr.f32.mxu0 0.0
    %719 = vmatmul.mubr.f32.gmra.mrb[0].mxu0 %v629
    %v720 = vpop.f32.mrb[0].mxu0
    %v721 = vadd.f32 0.0, %v720
    %v722 = vpop.f32.mrb[0].mxu0
    %723 = vmatprep.mubr.f32.mxu0 0.0
    %724 = vmatmul.mubr.f32.gmra.mrb[0].mxu0 %v632
    %v725 = vpop.f32.mrb[0].mxu0
    %v726 = vadd.f32 0.0, %v725
    %v727 = vpop.f32.mrb[0].mxu0
    %728 = vmatprep.mubr.f32.mxu0 0.0
    %729 = vmatmul.mubr.f32.gmra.mrb[0].mxu0 %v635
    %v730 = vpop.f32.mrb[0].mxu0
    %v731 = vadd.f32 0.0, %v730
    %v732 = vpop.f32.mrb[0].mxu0
    %733 = vmatprep.mubr.f32.mxu0 0.0
    %734 = vmatmul.mubr.f32.gmra.mrb[0].mxu0 %v638
    %v735 = vpop.f32.mrb[0].mxu0
    %v736 = vadd.f32 0.0, %v735
    %v737 = vpop.f32.mrb[0].mxu0
    %738 = vmatprep.mubr.f32.mxu0 0.0
    %739 = vmatmul.mubr.f32.gmra.mrb[0].mxu0 %v641
    %v740 = vpop.f32.mrb[0].mxu0
    %v741 = vadd.f32 0.0, %v740
    %v742 = vpop.f32.mrb[0].mxu0
    %743 = vmatprep.mubr.f32.mxu0 0.0
    %744 = vmatmul.mubr.f32.gmra.mrb[0].mxu0 %v644
    %v745 = vpop.f32.mrb[0].mxu0
    %v746 = vadd.f32 0.0, %v745
    %v747 = vpop.f32.mrb[0].mxu0
    %748 = vmatprep.mubr.f32.mxu0 0.0
    %749 = vmatmul.mubr.f32.gmra.mrb[0].mxu0 %v647
    %v750 = vpop.f32.mrb[0].mxu0
    %v751 = vadd.f32 0.0, %v750
    %v752 = vpop.f32.mrb[0].mxu0
    %753 = vdwg.mxu0
    %v754 = vmax.f32 %v716, 0.0
    %v755 = vmax.f32 %v721, 0.0
    %v756 = vmax.f32 %v726, 0.0
    %v757 = vmax.f32 %v731, 0.0
    %v758 = vmax.f32 %v736, 0.0
    %v759 = vmax.f32 %v741, 0.0
    %v760 = vmax.f32 %v746, 0.0
    %v761 = vmax.f32 %v751, 0.0
    %v762 = vld [vmem:[%s3] sm:$0xff]
    %v764 = vsel %vm186, %v762, 0
    %766 = vmatprep.subr.mxu0 0.0
    %767 = vmatpush1.msra.mxu0 %v754
    %768 = vmatprep.subr.mxu0 0.0
    %769 = vmatpush1.msra.mxu0 %v755
    %770 = vmatprep.subr.mxu0 0.0
    %771 = vmatpush1.msra.mxu0 %v756
    %772 = vmatprep.subr.mxu0 0.0
    %773 = vmatpush1.msra.mxu0 %v757
    %774 = vmatprep.subr.mxu0 0.0
    %775 = vmatpush1.msra.mxu0 %v758
    %776 = vmatprep.subr.mxu0 0.0
    %777 = vmatpush1.msra.mxu0 %v759
    %778 = vmatprep.subr.mxu0 0.0
    %779 = vmatpush1.msra.mxu0 %v760
    %780 = vmatprep.subr.mxu0 0.0
    %781 = vmatpush1.msra.mxu0 %v761
    %782 = vmatprep.subr.mxu0 0.0
    %783 = vmatpush1.msra.mxu0 0.0
    %784 = vmatprep.subr.mxu0 0.0
    %785 = vmatpush1.msra.mxu0 0.0
    %786 = vmatprep.subr.mxu0 0.0
    %787 = vmatpush1.msra.mxu0 0.0
    %788 = vmatprep.subr.mxu0 0.0
    %789 = vmatpush1.msra.mxu0 0.0
    %790 = vmatprep.subr.mxu0 0.0
    %791 = vmatpush1.msra.mxu0 0.0
    %792 = vmatprep.subr.mxu0 0.0
    %793 = vmatpush1.msra.mxu0 0.0
    %794 = vmatprep.subr.mxu0 0.0
    %795 = vmatpush1.msra.mxu0 0.0
    %796 = vmatprep.subr.mxu0 0.0
    %797 = vmatpush1.msra.mxu0 0.0
    %798 = vmatprep.subr.mxu0 0.0
    %799 = vmatpush1.msra.mxu0 0.0
    %800 = vmatprep.subr.mxu0 0.0
    %801 = vmatpush1.msra.mxu0 0.0
    %802 = vmatprep.subr.mxu0 0.0
    %803 = vmatpush1.msra.mxu0 0.0
    %804 = vmatprep.subr.mxu0 0.0
    %805 = vmatpush1.msra.mxu0 0.0
    %806 = vmatprep.subr.mxu0 0.0
    %807 = vmatpush1.msra.mxu0 0.0
    %808 = vmatprep.subr.mxu0 0.0
    %809 = vmatpush1.msra.mxu0 0.0
    %810 = vmatprep.subr.mxu0 0.0
    %811 = vmatpush1.msra.mxu0 0.0
    %812 = vmatprep.subr.mxu0 0.0
    %813 = vmatpush1.msra.mxu0 0.0
    %814 = vmatprep.subr.mxu0 0.0
    %815 = vmatpush1.msra.mxu0 0.0
    %816 = vmatprep.subr.mxu0 0.0
    %817 = vmatpush1.msra.mxu0 0.0
    %818 = vmatprep.subr.mxu0 0.0
    %819 = vmatpush1.msra.mxu0 0.0
    %820 = vmatprep.subr.mxu0 0.0
    %821 = vmatpush1.msra.mxu0 0.0
    %822 = vmatprep.subr.mxu0 0.0
    %823 = vmatpush1.msra.mxu0 0.0
    %824 = vmatprep.subr.mxu0 0.0
    %825 = vmatpush1.msra.mxu0 0.0
    %826 = vmatprep.subr.mxu0 0.0
    %827 = vmatpush1.msra.mxu0 0.0
    %828 = vmatprep.subr.mxu0 0.0
    %829 = vmatpush1.msra.mxu0 0.0
    %830 = vmatprep.mubr.f32.mxu0 0.0
    %831 = vmatmul.mubr.f32.gmra.mrb[0].mxu0 %v764
    %v832 = vpop.f32.mrb[0].mxu0
    %v833 = vadd.f32 0.0, %v832
    %v834 = vpop.f32.mrb[0].mxu0
    %835 = vdwg.mxu0
    %v836 = vtanh.pop %v833
    %v837 = vmul.f32 %v836, 6.2831855
    %v838 = vlaneseq
    %v839 = vshrl.u32 %v838, 7
    %vm840 = vcmp.eq.s32.totalorder %v839, 4
    %v841 = vlaneseq
    %v842 = vshrl.u32 %v841, 7
    %v843 = vsub.s32 4, %v842
    %v844 = vrot.slane %v837, %v843
    %v845 = vsel %vm840, %v844, %v833
    %846 = vst [vmem:[%s4] sm:$0xff] %v845
    // Predicated region
    $region22: #{contact_net_forward.1} parent=1 // pred_check
      _
    $region23: #{contact_net_forward.1} parent=1 // pred_check_branch
      %848 = sbr.rel (0) target = $region25
    $region24: #{contact_net_forward.1} parent=1 // pred_region
      _
    $region25: #{contact_net_forward.1} parent=1 // pred_fallthru
      _
    // Predicated region
    $region26: #{contact_net_forward.1} parent=1 // pred_check
      _
    $region27: #{contact_net_forward.1} parent=1 // pred_check_branch
      %850 = sbr.rel (0) target = $region29
    $region28: #{contact_net_forward.1} parent=1 // pred_region
      _
    $region29: #{contact_net_forward.1} parent=1 // pred_fallthru
      _
    %851 = vsyncpa [#allocation3], 1

</llo_original>
